<compile_context>
chip_gen: v5e
topology: v5e:2x2
jax: 0.10.0
libtpu: 0.0.40
codegen_flags: <defaults>
</compile_context>

<pallas_src>
import functools
import math

import jax
import jax.numpy as jnp
from jax.experimental import pallas as pl
from jax.experimental.pallas import tpu as pltpu


def _bclassifier_kernel(feats_ref, mfeats_ref, wcat_ref, bcat_ref,
                        araw_ref, m_ref, l_ref, bacc_ref,
                        qmax_scr, m_scr, l_scr, bacc_scr,
                        *, n_valid, tile_n, n_q, tiles_per_split):
    s_idx = pl.program_id(0)           # split index ("parallel"; one per TC on v7x)
    i = pl.program_id(1)               # tile within split (carried, "arbitrary")
    last = pl.num_programs(1) - 1

    # ---- per-split prologue: q_max from the per-class top instances; init stats ----
    @pl.when(i == 0)
    def _():
        mqv = jnp.dot(mfeats_ref[...], wcat_ref[...],
                      preferred_element_type=jnp.float32) + bcat_ref[...]   # (Ccls, n_q+D)
        qmax_scr[...] = jnp.tanh(mqv[:, :n_q])                              # (Ccls, n_q)
        m_scr[...] = jnp.full(m_scr.shape, -1e30, jnp.float32)
        l_scr[...] = jnp.zeros(l_scr.shape, jnp.float32)
        bacc_scr[...] = jnp.zeros(bacc_scr.shape, jnp.float32)

    g = s_idx * tiles_per_split + i                 # global tile index over N

    # Zero rows past N so garbage from the ragged boundary block cannot reach V.
    x = feats_ref[...]
    row = g * tile_n + jax.lax.broadcasted_iota(jnp.int32, (x.shape[0], 1), 0)
    x = jnp.where(row < n_valid, x, jnp.zeros((), x.dtype))

    # ---- fused [Q | V] projection: one MXU matmul (bf16 operands, f32 acc) ----
    qv = jnp.dot(x, wcat_ref[...], preferred_element_type=jnp.float32) + bcat_ref[...]
    q_t = jnp.tanh(qv[:, :n_q])                                             # (tn, n_q)
    v_t = qv[:, n_q:]                                                       # (tn, D)

    # ---- lane-dense attention scores (Ccls, tn), contracting the n_q dim ----
    s = jax.lax.dot_general(qmax_scr[...], q_t,
                            dimension_numbers=(((1,), (1,)), ((), ())),
                            preferred_element_type=jnp.float32)
    s = s * (1.0 / math.sqrt(n_q))
    col = g * tile_n + jax.lax.broadcasted_iota(jnp.int32, s.shape, 1)
    valid = col < n_valid
    s = jnp.where(valid, s, -1e30)                  # mask ragged / overshoot columns
    araw_ref[...] = s[None]                         # stream raw A^T tile back to HBM

    # ---- flash-style online softmax stats + unnormalized B accumulation ----
    m_old = m_scr[...]
    m_new = jnp.maximum(m_old, jnp.max(s, axis=-1, keepdims=True))
    alpha = jnp.exp(m_old - m_new)
    p = jnp.where(valid, jnp.exp(s - m_new), 0.0)   # masked so empty tiles add nothing
    l_scr[...] = alpha * l_scr[...] + jnp.sum(p, axis=-1, keepdims=True)
    bacc_scr[...] = alpha * bacc_scr[...] + jnp.dot(
        p, v_t, preferred_element_type=jnp.float32)
    m_scr[...] = m_new

    # ---- per-split epilogue: emit flash partials (exact combine in the wrapper) ----
    @pl.when(i == last)
    def _():
        m_ref[...] = m_scr[...][None]
        l_ref[...] = l_scr[...][None]
        bacc_ref[...] = bacc_scr[...][None]


def bclassifier_forward(feats, c, params, *, tile_n=4096, num_splits=2, use_bf16=True):
    """DSMIL BClassifier forward.  feats: (N, D), c: (N, Ccls) instance scores.

    Returns (C, A, B) with C: (1, Ccls), A: (N, Ccls), B: (1, Ccls, D),
    matching the PyTorch module's forward().
    """
    N, D = feats.shape
    Ccls = c.shape[1]
    NQ = params["wq"].shape[0]                              # 128

    # Glue: torch.sort(c, 0, descending=True) -> m_indices[0] == per-class argmax
    # (both take the first maximal index, so tie-breaking matches).
    top_idx = jnp.argmax(c, axis=0)                         # (Ccls,)
    m_feats = jnp.take(feats, top_idx, axis=0)              # (Ccls, D)

    # Pre-transposed, fused projection weight [Q | V]: (D, NQ + D).
    w_cat = jnp.concatenate([params["wq"].T, params["wv"].T], axis=1)
    b_cat = jnp.concatenate([params["bq"], params["bv"]])[None, :].astype(jnp.float32)

    op_dtype = jnp.bfloat16 if use_bf16 else jnp.float32
    feats_in = feats.astype(op_dtype)
    m_feats = m_feats.astype(op_dtype)
    w_cat = w_cat.astype(op_dtype)

    # Tile the instance axis; NO padding copy -- ragged last tile is masked in-kernel.
    if N <= tile_n:
        tn = N                                              # single block == full array
    else:
        tn = (tile_n // 8) * 8
    T = pl.cdiv(N, tn)
    n_split = max(1, min(num_splits, T))                    # 2 -> both TCs on v7x
    T_per = pl.cdiv(T, n_split)
    Tg = n_split * T_per                                    # grid tiles (>= T; extras masked)

    kernel = functools.partial(_bclassifier_kernel, n_valid=N, tile_n=tn,
                               n_q=NQ, tiles_per_split=T_per)

    out_shapes = (
        jax.ShapeDtypeStruct((Tg, Ccls, tn), jnp.float32),      # streamed raw A^T tiles
        jax.ShapeDtypeStruct((n_split, Ccls, 1), jnp.float32),  # per-split running max
        jax.ShapeDtypeStruct((n_split, Ccls, 1), jnp.float32),  # per-split running sum
        jax.ShapeDtypeStruct((n_split, Ccls, D), jnp.float32),  # per-split unnormalized B
    )

    # VMEM budget from the actual tiles + f32 temporaries; keep well below v7x 64 MiB.
    it = jnp.dtype(op_dtype).itemsize
    est = (2 * tn * D * it                      # feats double buffer
           + 2 * Ccls * tn * 4                  # streamed A^T tile double buffer
           + 3 * tn * (NQ + D) * 4              # qv / q_t / v_t f32 temporaries
           + (D + 1) * (NQ + D) * 4 + Ccls * D * 4
           + 2 * Ccls * (D + 2) * 4 + Ccls * (NQ + D + 2) * 4)
    vmem_limit = int(min(max(2 * est + (8 << 20), 8 << 20), 48 << 20))

    a_raw, m_p, l_p, b_p = pl.pallas_call(
        kernel,
        grid=(n_split, T_per),
        in_specs=[
            # feats streamed over N; clamp overshoot tiles to the last real block.
            pl.BlockSpec((tn, D), lambda s, i: (jnp.minimum(s * T_per + i, T - 1), 0)),
            pl.BlockSpec((Ccls, D), lambda s, i: (0, 0)),         # m_feats (resident)
            pl.BlockSpec((D, NQ + D), lambda s, i: (0, 0)),       # fused [wq.T | wv.T]
            pl.BlockSpec((1, NQ + D), lambda s, i: (0, 0)),       # fused bias
        ],
        out_specs=(
            pl.BlockSpec((1, Ccls, tn), lambda s, i: (s * T_per + i, 0, 0)),
            pl.BlockSpec((1, Ccls, 1), lambda s, i: (s, 0, 0)),
            pl.BlockSpec((1, Ccls, 1), lambda s, i: (s, 0, 0)),
            pl.BlockSpec((1, Ccls, D), lambda s, i: (s, 0, 0)),
        ),
        out_shape=out_shapes,
        scratch_shapes=[
            pltpu.VMEM((Ccls, NQ), jnp.float32),   # q_max
            pltpu.VMEM((Ccls, 1), jnp.float32),    # running max
            pltpu.VMEM((Ccls, 1), jnp.float32),    # running sum
            pltpu.VMEM((Ccls, D), jnp.float32),    # running (unnormalized) B
        ],
        compiler_params=pltpu.CompilerParams(
            dimension_semantics=("parallel", "arbitrary"),
            vmem_limit_bytes=vmem_limit,
        ),
    )(feats_in, m_feats, w_cat, b_cat)

    # ---- exact flash combine of the per-split partials (tiny, wrapper-side) ----
    m_g = jnp.max(m_p, axis=0)                               # (Ccls, 1)
    scale = jnp.exp(m_p - m_g[None])                         # (n_split, Ccls, 1)
    l_g = jnp.sum(l_p * scale, axis=0)                       # (Ccls, 1)
    B = jnp.sum(b_p * scale, axis=0) / l_g                   # (Ccls, D), exact division

    # Normalize the streamed raw scores; layout plumbing only afterwards.
    a_norm = jnp.exp(a_raw - m_g[None]) / l_g[None]                          # (Tg, Ccls, tn)
    A = jnp.transpose(a_norm, (1, 0, 2)).reshape(Ccls, Tg * tn)[:, :N].T     # (N, Ccls)

    # Conv1d(Ccls, Ccls, kernel_size=D) head == single (1, Ccls*D) @ (Ccls*D, Ccls).
    wf2d = params["wf"].reshape(Ccls, Ccls * D).T.astype(jnp.float32)
    C = B.reshape(1, Ccls * D) @ wf2d + params["bf"][None, :].astype(jnp.float32)
    return C, A, B[None]


def _reference(feats, c, params):
    top_idx = jnp.argmax(c, axis=0)
    m_feats = feats[top_idx]
    V = feats @ params["wv"].T + params["bv"]
    Q = jnp.tanh(feats @ params["wq"].T + params["bq"])
    q_max = jnp.tanh(m_feats @ params["wq"].T + params["bq"])
    A = (Q @ q_max.T) / jnp.sqrt(jnp.float32(Q.shape[1]))
    A = jax.nn.softmax(A, axis=0)
    B = A.T @ V
    C = jnp.sum(params["wf"] * B[None, :, :], axis=(1, 2))[None, :] + params["bf"]
    return C, A, B[None]


if __name__ == "__main__":
    N, D, Ccls = 200, 32, 4      # instances, input_size, output_class
    key = jax.random.PRNGKey(0)
    k = jax.random.split(key, 8)

    feats = jax.random.normal(k[0], (N, D), jnp.float32)
    c = jax.random.normal(k[1], (N, Ccls), jnp.float32)

    params = dict(
        wq=jax.random.normal(k[2], (128, D), jnp.float32) * 0.05,        # q: Linear(D,128)
        bq=jax.random.normal(k[3], (128,), jnp.float32) * 0.05,
        wv=jax.random.normal(k[4], (D, D), jnp.float32) * 0.05,          # v: Linear(D,D)
        bv=jax.random.normal(k[5], (D,), jnp.float32) * 0.05,
        wf=jax.random.normal(k[6], (Ccls, Ccls, D), jnp.float32) * 0.05, # Conv1d weight
        bf=jax.random.normal(k[7], (Ccls,), jnp.float32) * 0.05,
    )

    Cr, Ar, Br = _reference(feats, c, params)

    # 1) Default config (bf16, single full-extent tile since N <= tile_n).
    C, A, B = bclassifier_forward(feats, c, params)
    jax.block_until_ready((C, A, B))
    assert jnp.allclose(C, Cr, atol=5e-3, rtol=5e-3), "C mismatch (default bf16)"
    assert jnp.allclose(A, Ar, atol=5e-3, rtol=5e-3), "A mismatch (default bf16)"
    assert jnp.allclose(B, Br, atol=5e-3, rtol=5e-3), "B mismatch (default bf16)"

    # 2) Multi-tile streaming + 2-way split (4 tiles -> 2 per split), bf16 path.
    C, A, B = bclassifier_forward(feats, c, params, tile_n=64, num_splits=2)
    jax.block_until_ready((C, A, B))
    assert jnp.allclose(C, Cr, atol=5e-3, rtol=5e-3), "C mismatch (bf16 tiled)"
    assert jnp.allclose(A, Ar, atol=5e-3, rtol=5e-3), "A mismatch (bf16 tiled)"
    assert jnp.allclose(B, Br, atol=5e-3, rtol=5e-3), "B mismatch (bf16 tiled)"

    # 3) f32 path with an uneven split (5 real tiles over a 2x3 grid -> one
    #    fully-masked overshoot tile), exercising the masking/clamp logic.
    C, A, B = bclassifier_forward(feats, c, params, tile_n=48, num_splits=2,
                                  use_bf16=False)
    jax.block_until_ready((C, A, B))
    assert jnp.allclose(C, Cr, atol=2e-3, rtol=2e-3), "C mismatch (f32 ragged)"
    assert jnp.allclose(A, Ar, atol=2e-3, rtol=2e-3), "A mismatch (f32 ragged)"
    assert jnp.allclose(B, Br, atol=2e-3, rtol=2e-3), "B mismatch (f32 ragged)"

    print("KERNEL_OK")
</pallas_src>

<mosaic_0001>
module attributes {stable_mosaic.version = 11 : i64} {
  func.func @_bclassifier_kernel(%arg0: i32, %arg1: i32, %arg2: memref<200x32xbf16, #tpu.memory_space<vmem>>, %arg3: memref<4x32xbf16, #tpu.memory_space<vmem>>, %arg4: memref<32x160xbf16, #tpu.memory_space<vmem>>, %arg5: memref<1x160xf32, #tpu.memory_space<vmem>>, %arg6: memref<1x4x200xf32, #tpu.memory_space<vmem>>, %arg7: memref<1x4x1xf32, #tpu.memory_space<vmem>>, %arg8: memref<1x4x1xf32, #tpu.memory_space<vmem>>, %arg9: memref<1x4x32xf32, #tpu.memory_space<vmem>>, %arg10: memref<4x128xf32, #tpu.memory_space<vmem>>, %arg11: memref<4x1xf32, #tpu.memory_space<vmem>>, %arg12: memref<4x1xf32, #tpu.memory_space<vmem>>, %arg13: memref<4x32xf32, #tpu.memory_space<vmem>>) attributes {dimension_semantics = [#tpu.dimension_semantics<parallel>, #tpu.dimension_semantics<arbitrary>], iteration_bounds = array<i64: 1, 1>, scalar_prefetch = 0 : i64, scratch_operands = 4 : i64, tpu.core_type = #tpu.core_type<tc>, window_params = [{transform_indices = @transform_0, window_bounds = array<i64: 200, 32>}, {pipeline_mode = #tpu.pipeline_mode<synchronous>, transform_indices = @transform_1, window_bounds = array<i64: 4, 32>}, {pipeline_mode = #tpu.pipeline_mode<synchronous>, transform_indices = @transform_2, window_bounds = array<i64: 32, 160>}, {pipeline_mode = #tpu.pipeline_mode<synchronous>, transform_indices = @transform_3, window_bounds = array<i64: 1, 160>}, {transform_indices = @transform_4, window_bounds = array<i64: 1, 4, 200>}, {transform_indices = @transform_5, window_bounds = array<i64: 1, 4, 1>}, {transform_indices = @transform_6, window_bounds = array<i64: 1, 4, 1>}, {transform_indices = @transform_7, window_bounds = array<i64: 1, 4, 32>}]} {
    %c0_i32 = arith.constant 0 : i32
    %0 = arith.cmpi eq, %arg1, %c0_i32 : i32
    %1 = arith.extui %0 : i1 to i32
    %c0_i32_0 = arith.constant 0 : i32
    %2 = arith.cmpi ne, %1, %c0_i32_0 : i32
    scf.if %2 {
      %c0_36 = arith.constant 0 : index
      %c0_37 = arith.constant 0 : index
      %65 = vector.load %arg3[%c0_36, %c0_37] : memref<4x32xbf16, #tpu.memory_space<vmem>>, vector<4x32xbf16>
      %c0_38 = arith.constant 0 : index
      %c0_39 = arith.constant 0 : index
      %66 = vector.load %arg4[%c0_38, %c0_39] : memref<32x160xbf16, #tpu.memory_space<vmem>>, vector<32x160xbf16>
      %cst_40 = arith.constant dense<0.000000e+00> : vector<4x160xf32>
      %67 = tpu.matmul %65, %66, %cst_40 {dimension_numbers = #tpu.dot_dimension_numbers<[1], [0], [0], [1], [0, 0, 1, 1], [], []>} : vector<4x32xbf16>, vector<32x160xbf16>, vector<4x160xf32> -> vector<4x160xf32>
      %c0_41 = arith.constant 0 : index
      %c0_42 = arith.constant 0 : index
      %68 = vector.load %arg5[%c0_41, %c0_42] : memref<1x160xf32, #tpu.memory_space<vmem>>, vector<1x160xf32>
      %69 = vector.broadcast %68 : vector<1x160xf32> to vector<4x160xf32>
      %70 = arith.addf %67, %69 : vector<4x160xf32>
      %71 = vector.extract_strided_slice %70 {offsets = [0, 0], sizes = [4, 128], strides = [1, 1]} : vector<4x160xf32> to vector<4x128xf32>
      %72 = math.tanh %71 : vector<4x128xf32>
      %c0_43 = arith.constant 0 : index
      %c0_44 = arith.constant 0 : index
      %73 = vector.load %arg10[%c0_43, %c0_44] : memref<4x128xf32, #tpu.memory_space<vmem>>, vector<4x128xf32>
      tpu.vector_store %arg10[%c0_43, %c0_44], %72 {strides = array<i32>} : memref<4x128xf32, #tpu.memory_space<vmem>>, vector<4x128xf32>,
      %cst_45 = arith.constant -1.000000e+30 : f32
      %74 = vector.broadcast %cst_45 : f32 to vector<4x1xf32>
      %c0_46 = arith.constant 0 : index
      %c0_47 = arith.constant 0 : index
      %75 = vector.load %arg11[%c0_46, %c0_47] : memref<4x1xf32, #tpu.memory_space<vmem>>, vector<4x1xf32>
      tpu.vector_store %arg11[%c0_46, %c0_47], %74 {strides = array<i32>} : memref<4x1xf32, #tpu.memory_space<vmem>>, vector<4x1xf32>,
      %cst_48 = arith.constant 0.000000e+00 : f32
      %76 = vector.broadcast %cst_48 : f32 to vector<4x1xf32>
      %c0_49 = arith.constant 0 : index
      %c0_50 = arith.constant 0 : index
      %77 = vector.load %arg12[%c0_49, %c0_50] : memref<4x1xf32, #tpu.memory_space<vmem>>, vector<4x1xf32>
      tpu.vector_store %arg12[%c0_49, %c0_50], %76 {strides = array<i32>} : memref<4x1xf32, #tpu.memory_space<vmem>>, vector<4x1xf32>,
      %cst_51 = arith.constant 0.000000e+00 : f32
      %78 = vector.broadcast %cst_51 : f32 to vector<4x32xf32>
      %c0_52 = arith.constant 0 : index
      %c0_53 = arith.constant 0 : index
      %79 = vector.load %arg13[%c0_52, %c0_53] : memref<4x32xf32, #tpu.memory_space<vmem>>, vector<4x32xf32>
      tpu.vector_store %arg13[%c0_52, %c0_53], %78 {strides = array<i32>} : memref<4x32xf32, #tpu.memory_space<vmem>>, vector<4x32xf32>,
    } else {
    }
    %c1_i32 = arith.constant 1 : i32
    %3 = arith.muli %arg0, %c1_i32 : i32
    %4 = arith.addi %3, %arg1 : i32
    %c0 = arith.constant 0 : index
    %c0_1 = arith.constant 0 : index
    %5 = vector.load %arg2[%c0, %c0_1] : memref<200x32xbf16, #tpu.memory_space<vmem>>, vector<200x32xbf16>
    %c200_i32 = arith.constant 200 : i32
    %6 = arith.muli %4, %c200_i32 : i32
    %7 = tpu.iota {dimensions = array<i32: 0>} : vector<200x1xi32>
    %8 = vector.broadcast %6 : i32 to vector<200x1xi32>
    %9 = arith.addi %8, %7 : vector<200x1xi32>
    %c200_i32_2 = arith.constant 200 : i32
    %10 = vector.broadcast %c200_i32_2 : i32 to vector<200x1xi32>
    %11 = arith.cmpi slt, %9, %10 : vector<200x1xi32>
    %cst = arith.constant 0.000000e+00 : bf16
    %12 = vector.shape_cast %11 : vector<200x1xi1> to vector<200x1xi1>
    %13 = vector.broadcast %12 : vector<200x1xi1> to vector<200x32xi1>
    %14 = vector.broadcast %cst : bf16 to vector<200x32xbf16>
    %15 = arith.select %13, %5, %14 : vector<200x32xi1>, vector<200x32xbf16>
    %c0_3 = arith.constant 0 : index
    %c0_4 = arith.constant 0 : index
    %16 = vector.load %arg4[%c0_3, %c0_4] : memref<32x160xbf16, #tpu.memory_space<vmem>>, vector<32x160xbf16>
    %cst_5 = arith.constant dense<0.000000e+00> : vector<200x160xf32>
    %17 = tpu.matmul %15, %16, %cst_5 {dimension_numbers = #tpu.dot_dimension_numbers<[1], [0], [0], [1], [0, 0, 1, 1], [], []>} : vector<200x32xbf16>, vector<32x160xbf16>, vector<200x160xf32> -> vector<200x160xf32>
    %c0_6 = arith.constant 0 : index
    %c0_7 = arith.constant 0 : index
    %18 = vector.load %arg5[%c0_6, %c0_7] : memref<1x160xf32, #tpu.memory_space<vmem>>, vector<1x160xf32>
    %19 = vector.broadcast %18 : vector<1x160xf32> to vector<200x160xf32>
    %20 = arith.addf %17, %19 : vector<200x160xf32>
    %21 = vector.extract_strided_slice %20 {offsets = [0, 0], sizes = [200, 128], strides = [1, 1]} : vector<200x160xf32> to vector<200x128xf32>
    %22 = math.tanh %21 : vector<200x128xf32>
    %23 = vector.extract_strided_slice %20 {offsets = [0, 128], sizes = [200, 32], strides = [1, 1]} : vector<200x160xf32> to vector<200x32xf32>
    %c0_8 = arith.constant 0 : index
    %c0_9 = arith.constant 0 : index
    %24 = vector.load %arg10[%c0_8, %c0_9] : memref<4x128xf32, #tpu.memory_space<vmem>>, vector<4x128xf32>
    %cst_10 = arith.constant dense<0.000000e+00> : vector<4x200xf32>
    %25 = tpu.matmul %24, %22, %cst_10 {dimension_numbers = #tpu.dot_dimension_numbers<[1], [1], [0], [0], [0, 0, 1, 0], [], []>} : vector<4x128xf32>, vector<200x128xf32>, vector<4x200xf32> -> vector<4x200xf32>
    %cst_11 = arith.constant 0.0883883461 : f32
    %26 = vector.broadcast %cst_11 : f32 to vector<4x200xf32>
    %27 = arith.mulf %25, %26 : vector<4x200xf32>
    %c200_i32_12 = arith.constant 200 : i32
    %28 = arith.muli %4, %c200_i32_12 : i32
    %29 = tpu.iota {dimensions = array<i32: 1>} : vector<4x200xi32>
    %30 = vector.broadcast %28 : i32 to vector<4x200xi32>
    %31 = arith.addi %30, %29 : vector<4x200xi32>
    %c200_i32_13 = arith.constant 200 : i32
    %32 = vector.broadcast %c200_i32_13 : i32 to vector<4x200xi32>
    %33 = arith.cmpi slt, %31, %32 : vector<4x200xi32>
    %cst_14 = arith.constant -1.000000e+30 : f32
    %34 = vector.broadcast %cst_14 : f32 to vector<4x200xf32>
    %35 = arith.select %33, %27, %34 : vector<4x200xi1>, vector<4x200xf32>
    %36 = vector.shape_cast %35 : vector<4x200xf32> to vector<1x4x200xf32>
    %c0_15 = arith.constant 0 : index
    %c0_16 = arith.constant 0 : index
    %c0_17 = arith.constant 0 : index
    %37 = vector.load %arg6[%c0_15, %c0_16, %c0_17] : memref<1x4x200xf32, #tpu.memory_space<vmem>>, vector<1x4x200xf32>
    tpu.vector_store %arg6[%c0_15, %c0_16, %c0_17], %36 {strides = array<i32>} : memref<1x4x200xf32, #tpu.memory_space<vmem>>, vector<1x4x200xf32>,
    %c0_18 = arith.constant 0 : index
    %c0_19 = arith.constant 0 : index
    %38 = vector.load %arg11[%c0_18, %c0_19] : memref<4x1xf32, #tpu.memory_space<vmem>>, vector<4x1xf32>
    %cst_20 = arith.constant dense<0xFF800000> : vector<4xf32>
    %39 = vector.multi_reduction <maximumf>, %35, %cst_20 [1] : vector<4x200xf32> to vector<4xf32>
    %40 = vector.shape_cast %39 : vector<4xf32> to vector<4x1xf32>
    %41 = arith.maximumf %38, %40 : vector<4x1xf32>
    %42 = arith.subf %38, %41 : vector<4x1xf32>
    %43 = math.exp %42 : vector<4x1xf32>
    %44 = vector.broadcast %41 : vector<4x1xf32> to vector<4x200xf32>
    %45 = arith.subf %35, %44 : vector<4x200xf32>
    %46 = math.exp %45 : vector<4x200xf32>
    %cst_21 = arith.constant 0.000000e+00 : f32
    %47 = vector.broadcast %cst_21 : f32 to vector<4x200xf32>
    %48 = arith.select %33, %46, %47 : vector<4x200xi1>, vector<4x200xf32>
    %c0_22 = arith.constant 0 : index
    %c0_23 = arith.constant 0 : index
    %49 = vector.load %arg12[%c0_22, %c0_23] : memref<4x1xf32, #tpu.memory_space<vmem>>, vector<4x1xf32>
    %50 = arith.mulf %43, %49 : vector<4x1xf32>
    %cst_24 = arith.constant dense<0.000000e+00> : vector<4xf32>
    %51 = vector.multi_reduction <add>, %48, %cst_24 [1] : vector<4x200xf32> to vector<4xf32>
    %52 = vector.shape_cast %51 : vector<4xf32> to vector<4x1xf32>
    %53 = arith.addf %50, %52 : vector<4x1xf32>
    %c0_25 = arith.constant 0 : index
    %c0_26 = arith.constant 0 : index
    %54 = vector.load %arg12[%c0_25, %c0_26] : memref<4x1xf32, #tpu.memory_space<vmem>>, vector<4x1xf32>
    tpu.vector_store %arg12[%c0_25, %c0_26], %53 {strides = array<i32>} : memref<4x1xf32, #tpu.memory_space<vmem>>, vector<4x1xf32>,
    %c0_27 = arith.constant 0 : index
    %c0_28 = arith.constant 0 : index
    %55 = vector.load %arg13[%c0_27, %c0_28] : memref<4x32xf32, #tpu.memory_space<vmem>>, vector<4x32xf32>
    %56 = vector.broadcast %43 : vector<4x1xf32> to vector<4x32xf32>
    %57 = arith.mulf %56, %55 : vector<4x32xf32>
    %cst_29 = arith.constant dense<0.000000e+00> : vector<4x32xf32>
    %58 = tpu.matmul %48, %23, %cst_29 {dimension_numbers = #tpu.dot_dimension_numbers<[1], [0], [0], [1], [0, 0, 1, 1], [], []>} : vector<4x200xf32>, vector<200x32xf32>, vector<4x32xf32> -> vector<4x32xf32>
    %59 = arith.addf %57, %58 : vector<4x32xf32>
    %c0_30 = arith.constant 0 : index
    %c0_31 = arith.constant 0 : index
    %60 = vector.load %arg13[%c0_30, %c0_31] : memref<4x32xf32, #tpu.memory_space<vmem>>, vector<4x32xf32>
    tpu.vector_store %arg13[%c0_30, %c0_31], %59 {strides = array<i32>} : memref<4x32xf32, #tpu.memory_space<vmem>>, vector<4x32xf32>,
    %c0_32 = arith.constant 0 : index
    %c0_33 = arith.constant 0 : index
    %61 = vector.load %arg11[%c0_32, %c0_33] : memref<4x1xf32, #tpu.memory_space<vmem>>, vector<4x1xf32>
    tpu.vector_store %arg11[%c0_32, %c0_33], %41 {strides = array<i32>} : memref<4x1xf32, #tpu.memory_space<vmem>>, vector<4x1xf32>,
    %c0_i32_34 = arith.constant 0 : i32
    %62 = arith.cmpi eq, %arg1, %c0_i32_34 : i32
    %63 = arith.extui %62 : i1 to i32
    %c0_i32_35 = arith.constant 0 : i32
    %64 = arith.cmpi ne, %63, %c0_i32_35 : i32
    scf.if %64 {
      %c0_36 = arith.constant 0 : index
      %c0_37 = arith.constant 0 : index
      %65 = vector.load %arg11[%c0_36, %c0_37] : memref<4x1xf32, #tpu.memory_space<vmem>>, vector<4x1xf32>
      %66 = vector.shape_cast %65 : vector<4x1xf32> to vector<1x4x1xf32>
      %c0_38 = arith.constant 0 : index
      %c0_39 = arith.constant 0 : index
      %c0_40 = arith.constant 0 : index
      %67 = vector.load %arg7[%c0_38, %c0_39, %c0_40] : memref<1x4x1xf32, #tpu.memory_space<vmem>>, vector<1x4x1xf32>
      tpu.vector_store %arg7[%c0_38, %c0_39, %c0_40], %66 {strides = array<i32>} : memref<1x4x1xf32, #tpu.memory_space<vmem>>, vector<1x4x1xf32>,
      %c0_41 = arith.constant 0 : index
      %c0_42 = arith.constant 0 : index
      %68 = vector.load %arg12[%c0_41, %c0_42] : memref<4x1xf32, #tpu.memory_space<vmem>>, vector<4x1xf32>
      %69 = vector.shape_cast %68 : vector<4x1xf32> to vector<1x4x1xf32>
      %c0_43 = arith.constant 0 : index
      %c0_44 = arith.constant 0 : index
      %c0_45 = arith.constant 0 : index
      %70 = vector.load %arg8[%c0_43, %c0_44, %c0_45] : memref<1x4x1xf32, #tpu.memory_space<vmem>>, vector<1x4x1xf32>
      tpu.vector_store %arg8[%c0_43, %c0_44, %c0_45], %69 {strides = array<i32>} : memref<1x4x1xf32, #tpu.memory_space<vmem>>, vector<1x4x1xf32>,
      %c0_46 = arith.constant 0 : index
      %c0_47 = arith.constant 0 : index
      %71 = vector.load %arg13[%c0_46, %c0_47] : memref<4x32xf32, #tpu.memory_space<vmem>>, vector<4x32xf32>
      %72 = vector.shape_cast %71 : vector<4x32xf32> to vector<1x4x32xf32>
      %c0_48 = arith.constant 0 : index
      %c0_49 = arith.constant 0 : index
      %c0_50 = arith.constant 0 : index
      %73 = vector.load %arg9[%c0_48, %c0_49, %c0_50] : memref<1x4x32xf32, #tpu.memory_space<vmem>>, vector<1x4x32xf32>
      tpu.vector_store %arg9[%c0_48, %c0_49, %c0_50], %72 {strides = array<i32>} : memref<1x4x32xf32, #tpu.memory_space<vmem>>, vector<1x4x32xf32>,
    } else {
    }
    return
  }
  func.func @transform_0(%arg0: i32, %arg1: i32) -> (i32, i32) {
    %c1_i32 = arith.constant 1 : i32
    %0 = arith.muli %arg0, %c1_i32 : i32
    %1 = arith.addi %0, %arg1 : i32
    %c0_i32 = arith.constant 0 : i32
    %2 = arith.minsi %1, %c0_i32 : i32
    %c0_i32_0 = arith.constant 0 : i32
    %c0_i32_1 = arith.constant 0 : i32
    return %2, %c0_i32_0 : i32, i32
  }
  func.func @transform_1(%arg0: i32, %arg1: i32) -> (i32, i32) {
    %c0_i32 = arith.constant 0 : i32
    %c0_i32_0 = arith.constant 0 : i32
    %c0_i32_1 = arith.constant 0 : i32
    return %c0_i32, %c0_i32_0 : i32, i32
  }
  func.func @transform_2(%arg0: i32, %arg1: i32) -> (i32, i32) {
    %c0_i32 = arith.constant 0 : i32
    %c0_i32_0 = arith.constant 0 : i32
    %c0_i32_1 = arith.constant 0 : i32
    return %c0_i32, %c0_i32_0 : i32, i32
  }
  func.func @transform_3(%arg0: i32, %arg1: i32) -> (i32, i32) {
    %c0_i32 = arith.constant 0 : i32
    %c0_i32_0 = arith.constant 0 : i32
    %c0_i32_1 = arith.constant 0 : i32
    return %c0_i32, %c0_i32_0 : i32, i32
  }
  func.func @transform_4(%arg0: i32, %arg1: i32) -> (i32, i32, i32) {
    %c1_i32 = arith.constant 1 : i32
    %0 = arith.muli %arg0, %c1_i32 : i32
    %1 = arith.addi %0, %arg1 : i32
    %c0_i32 = arith.constant 0 : i32
    %c0_i32_0 = arith.constant 0 : i32
    %c0_i32_1 = arith.constant 0 : i32
    return %1, %c0_i32, %c0_i32_0 : i32, i32, i32
  }
  func.func @transform_5(%arg0: i32, %arg1: i32) -> (i32, i32, i32) {
    %c0_i32 = arith.constant 0 : i32
    %c0_i32_0 = arith.constant 0 : i32
    %c0_i32_1 = arith.constant 0 : i32
    return %arg0, %c0_i32, %c0_i32_0 : i32, i32, i32
  }
  func.func @transform_6(%arg0: i32, %arg1: i32) -> (i32, i32, i32) {
    %c0_i32 = arith.constant 0 : i32
    %c0_i32_0 = arith.constant 0 : i32
    %c0_i32_1 = arith.constant 0 : i32
    return %arg0, %c0_i32, %c0_i32_0 : i32, i32, i32
  }
  func.func @transform_7(%arg0: i32, %arg1: i32) -> (i32, i32, i32) {
    %c0_i32 = arith.constant 0 : i32
    %c0_i32_0 = arith.constant 0 : i32
    %c0_i32_1 = arith.constant 0 : i32
    return %arg0, %c0_i32, %c0_i32_0 : i32, i32, i32
  }
}

</mosaic_0001>

<llo_original>
// kernel: tpu_custom_call.1
$region0: #{tpu_custom_call.1}
  #allocation0 [shape = 'u32[]', space=smem, size = 0x4, offset = 0x4, fixed_abs, tag = 'smem constant byte address 0x4 - core index']
  #allocation1 [shape = 'u32[72,128]{1,0:T(1,128)}', space=vmem, size = 0x9000, scoped, tag = 'internal scratch']
  #allocation2 [shape = 'f32[4,128]{1,0:T(4,128)}', space=vmem, size = 0x800, scoped, tag = 'scratch operand']
  #allocation3 [shape = 'f32[4,1]{1,0:T(4,128)}', space=vmem, size = 0x800, scoped, tag = 'scratch operand']
  #allocation4 [shape = 'f32[4,1]{1,0:T(4,128)}', space=vmem, size = 0x800, scoped, tag = 'scratch operand']
  #allocation5 [shape = 'f32[4,32]{1,0:T(4,128)}', space=vmem, size = 0x800, scoped, tag = 'scratch operand']
  %s0 = inlined_call_operand.vmem [shape: bf16[200,32], index: 0, kind: input, shape index: {}]
  %s1 = inlined_call_operand.vmem [shape: bf16[4,32], index: 1, kind: input, shape index: {}]
  %s2 = inlined_call_operand.vmem [shape: bf16[32,160], index: 2, kind: input, shape index: {}]
  %s3 = inlined_call_operand.vmem [shape: f32[1,160], index: 3, kind: input, shape index: {}]
  %s4 = inlined_call_operand.hbm [shape: f32[1,4,200], index: 4, kind: output, shape index: {0}]
  %s5 = inlined_call_operand.vmem [shape: f32[1,4,1], index: 5, kind: output, shape index: {1}]
  %s6 = inlined_call_operand.vmem [shape: f32[1,4,1], index: 6, kind: output, shape index: {2}]
  %s7 = inlined_call_operand.hbm [shape: f32[1,4,32], index: 7, kind: output, shape index: {3}]
  %8 = xla_tuple %s4, %s5, %s6, %s7
  %s9 = sld [smem:[#allocation0]]
  $region58: #{tpu_custom_call.1} parent=0
    _
  %s11 = ssub.s32 1, %s9
  %s12 = scalar_select 0, %s11, %s9
  $region1: #{tpu_custom_call.1} parent=0
    #allocation6 [shape = 'u8[4096]{0}', space=vmem, size = 0x1000, scoped, tag = 'output window, operand 0, single buffered']
    #allocation7 [shape = 's32[1]{0}', space=sflag, size = 0x4, scoped, tag = 'scoped memory for tpu_custom_call.1']
    #allocation8 [shape = 'u8[2048]{0}', space=vmem, size = 0x800, scoped, tag = 'output window, operand 3, single buffered']
    #allocation9 [shape = 's32[1]{0}', space=sflag, size = 0x4, scoped, tag = 'scoped memory for tpu_custom_call.1']
    %13 = vsyncpa [#allocation7], 0
    %14 = vsyncpa [#allocation9], 0
    // Predicated region
    $region2: #{tpu_custom_call.1} parent=1 // pred_check
      _
    $region3: #{tpu_custom_call.1} parent=1 // pred_check_branch
      %16 = sbr.rel (0) target = $region5
    $region4: #{tpu_custom_call.1} parent=1 // pred_region
      %s17 = sadd.s32 0, 0
      %p18 = scmp.lt.s32.totalorder %s17, 0
      %s19 = scalar_select %p18, %s17, 0
      %s20 = smul.u32 25, %s19
      %p21 = scmp.lt.s32.totalorder %s20, 24
      %s22 = scalar_select %p21, %s20, 24
      %s23 = smul.addr %s22, 4
      %s24 = scalar_lea.vmem %s0, %s23
      %s25 = sadd.s32 0, 0
      %p26 = scmp.lt.s32.totalorder %s25, 0
      %s27 = scalar_select %p26, %s25, 0
      %s28 = smul.u32 25, %s27
    $region5: #{tpu_custom_call.1} parent=1 // pred_fallthru
      _
    // Predicated region
    $region6: #{tpu_custom_call.1} parent=1 // pred_check
      _
    $region7: #{tpu_custom_call.1} parent=1 // pred_check_branch
      %30 = sbr.rel (0) target = $region9
    $region8: #{tpu_custom_call.1} parent=1 // pred_region
      _
    $region9: #{tpu_custom_call.1} parent=1 // pred_fallthru
      _
    // Predicated region
    $region10: #{tpu_custom_call.1} parent=1 // pred_check
      _
    $region11: #{tpu_custom_call.1} parent=1 // pred_check_branch
      %32 = sbr.rel (0) target = $region13
    $region12: #{tpu_custom_call.1} parent=1 // pred_region
      _
    $region13: #{tpu_custom_call.1} parent=1 // pred_fallthru
      _
    // Predicated region
    $region14: #{tpu_custom_call.1} parent=1 // pred_check
      _
    $region15: #{tpu_custom_call.1} parent=1 // pred_check_branch
      %34 = sbr.rel (0) target = $region17
    $region16: #{tpu_custom_call.1} parent=1 // pred_region
      _
    $region17: #{tpu_custom_call.1} parent=1 // pred_fallthru
      _
    %s35 = sadd.s32 0, 0
    %p36 = scmp.lt.s32.totalorder %s35, 0
    %s37 = scalar_select %p36, %s35, 0
    %s38 = smul.u32 25, %s37
    %p39 = scmp.lt.s32.totalorder %s38, 24
    %s40 = scalar_select %p39, %s38, 24
    %s41 = smul.addr %s40, 4
    %s42 = scalar_lea.vmem %s0, %s41
    %s43 = sadd.s32 0, 0
    %p44 = scmp.lt.s32.totalorder %s43, 0
    %s45 = scalar_select %p44, %s43, 0
    %s46 = smul.u32 25, %s45
    %p47 = scmp.lt.s32.totalorder %s46, 24
    %s48 = scalar_select %p47, %s46, 24
    %s49 = smul.addr %s48, 4
    %s50 = scalar_lea.vmem %s0, %s49
    %s51 = sadd.s32 0, 0
    %p52 = scmp.lt.s32.totalorder %s51, 0
    %s53 = scalar_select %p52, %s51, 0
    %s54 = smul.u32 25, %s53
    %s55 = sadd.s32 0, 0
    %p57 = scmp.eq.s32.totalorder 0, 0
    // Predicated region
    $region18: #{tpu_custom_call.1} parent=1 // pred_check
      %p58 = pneg %p57
    $region19: #{tpu_custom_call.1} parent=1 // pred_check_branch
      %60 = sbr.rel (%p58) target = $region21
    $region20: #{tpu_custom_call.1} parent=1 // pred_region
      %v61 = vld [vmem:[%s1] sm:$0x3]
      %v62 = vld [vmem:[%s2] sm:$0xff]
      %v63 = vld [vmem:[%s2 + $0x8] sm:$0xff]
      %v64 = vld [vmem:[%s2 + $0x10] sm:$0xff]
      %v65 = vld [vmem:[%s2 + $0x18] sm:$0xff]
      %v66 = vld [vmem:[%s3] sm:$0x3]
      %v68 = vperm.slane %v66, 0
      %v74 = vunpack.c.l.b16 %v62
      %v75 = vunpack.c.l.b16 %v63
      %v76 = vunpack.c.l.b16 %v64
      %v77 = vunpack.c.l.b16 %v65
      %v78 = vpack.c.b16 %v75, %v74
      %v79 = vpack.c.b16 %v77, %v76
      %vm82 = vcmask 261120
      %v84 = vsel %vm82, %v61, 0
      %86 = vmatpush.bf16.msra.mxu0 0
      %87 = vmatpush.bf16.msra.mxu0 0
      %88 = vmatpush.bf16.msra.mxu0 0
      %89 = vmatpush.bf16.msra.mxu0 0
      %90 = vmatpush.bf16.msra.mxu0 0
      %91 = vmatpush.bf16.msra.mxu0 0
      %92 = vmatpush.bf16.msra.mxu0 %v79
      %93 = vmatpush.bf16.msra.mxu0 %v78
      %94 = vmatmul.bf16.gmra.mxu0 %v84
      %v95 = vpop.f32.mrf.mxu0
      %v96 = vadd.f32 %v68, %v95
      %v97 = vpop.f32.mrf.mxu0
      %98 = vdwg.mxu0
      %v99 = vtanh.pop %v96
      %100 = vst [vmem:[#allocation2] sm:$0xf] %v99
      %vm101 = vcmask 3072
      %102 = vst.msk [vmem:[#allocation3] sm:$0xf] %vm101, -1e+30
      %103 = vst.msk [vmem:[#allocation4] sm:$0xf] %vm101, 0.0
      %vm104 = vcmask 257024
      %105 = vst.msk [vmem:[#allocation5] sm:$0xf] %vm104, 0.0
    $region21: #{tpu_custom_call.1} parent=1 // pred_fallthru
      _
    %s106 = sadd.s32 0, 0
    %v107 = vld [vmem:[%s50] sm:$0xf]
    %v108 = vld [vmem:[%s50 + $0x4] sm:$0xf]
    %v109 = vld [vmem:[%s50 + $0x8] sm:$0xf]
    %v110 = vld [vmem:[%s50 + $0xc] sm:$0xf]
    %v111 = vld [vmem:[%s50 + $0x10] sm:$0xf]
    %v112 = vld [vmem:[%s50 + $0x14] sm:$0xf]
    %v113 = vld [vmem:[%s50 + $0x18] sm:$0xf]
    %v114 = vld [vmem:[%s50 + $0x1c] sm:$0xf]
    %v115 = vld [vmem:[%s50 + $0x20] sm:$0xf]
    %v116 = vld [vmem:[%s50 + $0x24] sm:$0xf]
    %v117 = vld [vmem:[%s50 + $0x28] sm:$0xf]
    %v118 = vld [vmem:[%s50 + $0x2c] sm:$0xf]
    %v119 = vld [vmem:[%s50 + $0x30] sm:$0xf]
    %v120 = vld [vmem:[%s50 + $0x34] sm:$0xf]
    %v121 = vld [vmem:[%s50 + $0x38] sm:$0xf]
    %v122 = vld [vmem:[%s50 + $0x3c] sm:$0xf]
    %v123 = vld [vmem:[%s50 + $0x40] sm:$0xf]
    %v124 = vld [vmem:[%s50 + $0x44] sm:$0xf]
    %v125 = vld [vmem:[%s50 + $0x48] sm:$0xf]
    %v126 = vld [vmem:[%s50 + $0x4c] sm:$0xf]
    %v127 = vld [vmem:[%s50 + $0x50] sm:$0xf]
    %v128 = vld [vmem:[%s50 + $0x54] sm:$0xf]
    %v129 = vld [vmem:[%s50 + $0x58] sm:$0xf]
    %v130 = vld [vmem:[%s50 + $0x5c] sm:$0xf]
    %v131 = vld [vmem:[%s50 + $0x60] sm:$0xf]
    %s132 = smul.u32 %s106, 200
    %v133 = vlaneseq
    %v134 = vshrl.u32 %v133, 7
    %v135 = vadd.s32 %v134, 8
    %v136 = vadd.s32 %v134, 16
    %v137 = vadd.s32 %v134, 24
    %v138 = vadd.s32 %v134, 32
    %v139 = vadd.s32 %v134, 40
    %v140 = vadd.s32 %v134, 48
    %v141 = vadd.s32 %v134, 56
    %v142 = vadd.s32 %v134, 64
    %v143 = vadd.s32 %v134, 72
    %v144 = vadd.s32 %v134, 80
    %v145 = vadd.s32 %v134, 88
    %v146 = vadd.s32 %v134, 96
    %v147 = vadd.s32 %v134, 104
    %v148 = vadd.s32 %v134, 112
    %v149 = vadd.s32 %v134, 120
    %v150 = vadd.s32 %v134, 128
    %v151 = vadd.s32 %v134, 136
    %v152 = vadd.s32 %v134, 144
    %v153 = vadd.s32 %v134, 152
    %v154 = vadd.s32 %v134, 160
    %v155 = vadd.s32 %v134, 168
    %v156 = vadd.s32 %v134, 176
    %v157 = vadd.s32 %v134, 184
    %v158 = vadd.s32 %v134, 192
    %v159 = vstv %s132
    %v160 = vadd.s32 %v159, %v134
    %v161 = vadd.s32 %v159, %v135
    %v162 = vadd.s32 %v159, %v136
    %v163 = vadd.s32 %v159, %v137
    %v164 = vadd.s32 %v159, %v138
    %v165 = vadd.s32 %v159, %v139
    %v166 = vadd.s32 %v159, %v140
    %v167 = vadd.s32 %v159, %v141
    %v168 = vadd.s32 %v159, %v142
    %v169 = vadd.s32 %v159, %v143
    %v170 = vadd.s32 %v159, %v144
    %v171 = vadd.s32 %v159, %v145
    %v172 = vadd.s32 %v159, %v146
    %v173 = vadd.s32 %v159, %v147
    %v174 = vadd.s32 %v159, %v148
    %v175 = vadd.s32 %v159, %v149
    %v176 = vadd.s32 %v159, %v150
    %v177 = vadd.s32 %v159, %v151
    %v178 = vadd.s32 %v159, %v152
    %v179 = vadd.s32 %v159, %v153
    %v180 = vadd.s32 %v159, %v154
    %v181 = vadd.s32 %v159, %v155
    %v182 = vadd.s32 %v159, %v156
    %v183 = vadd.s32 %v159, %v157
    %v184 = vadd.s32 %v159, %v158
    %vm185 = vcmp.lt.s32.totalorder %v160, 200
    %vm186 = vcmp.lt.s32.totalorder %v161, 200
    %vm187 = vcmp.lt.s32.totalorder %v162, 200
    %vm188 = vcmp.lt.s32.totalorder %v163, 200
    %vm189 = vcmp.lt.s32.totalorder %v164, 200
    %vm190 = vcmp.lt.s32.totalorder %v165, 200
    %vm191 = vcmp.lt.s32.totalorder %v166, 200
    %vm192 = vcmp.lt.s32.totalorder %v167, 200
    %vm193 = vcmp.lt.s32.totalorder %v168, 200
    %vm194 = vcmp.lt.s32.totalorder %v169, 200
    %vm195 = vcmp.lt.s32.totalorder %v170, 200
    %vm196 = vcmp.lt.s32.totalorder %v171, 200
    %vm197 = vcmp.lt.s32.totalorder %v172, 200
    %vm198 = vcmp.lt.s32.totalorder %v173, 200
    %vm199 = vcmp.lt.s32.totalorder %v174, 200
    %vm200 = vcmp.lt.s32.totalorder %v175, 200
    %vm201 = vcmp.lt.s32.totalorder %v176, 200
    %vm202 = vcmp.lt.s32.totalorder %v177, 200
    %vm203 = vcmp.lt.s32.totalorder %v178, 200
    %vm204 = vcmp.lt.s32.totalorder %v179, 200
    %vm205 = vcmp.lt.s32.totalorder %v180, 200
    %vm206 = vcmp.lt.s32.totalorder %v181, 200
    %vm207 = vcmp.lt.s32.totalorder %v182, 200
    %vm208 = vcmp.lt.s32.totalorder %v183, 200
    %vm209 = vcmp.lt.s32.totalorder %v184, 200
    %v210 = vsel %vm185, 1, 0
    %v211 = vsel %vm186, 1, 0
    %v212 = vsel %vm187, 1, 0
    %v213 = vsel %vm188, 1, 0
    %v214 = vsel %vm189, 1, 0
    %v215 = vsel %vm190, 1, 0
    %v216 = vsel %vm191, 1, 0
    %v217 = vsel %vm192, 1, 0
    %v218 = vsel %vm193, 1, 0
    %v219 = vsel %vm194, 1, 0
    %v220 = vsel %vm195, 1, 0
    %v221 = vsel %vm196, 1, 0
    %v222 = vsel %vm197, 1, 0
    %v223 = vsel %vm198, 1, 0
    %v224 = vsel %vm199, 1, 0
    %v225 = vsel %vm200, 1, 0
    %v226 = vsel %vm201, 1, 0
    %v227 = vsel %vm202, 1, 0
    %v228 = vsel %vm203, 1, 0
    %v229 = vsel %vm204, 1, 0
    %v230 = vsel %vm205, 1, 0
    %v231 = vsel %vm206, 1, 0
    %v232 = vsel %vm207, 1, 0
    %v233 = vsel %vm208, 1, 0
    %v234 = vsel %vm209, 1, 0
    %vm235 = vcmp.eq.s32.totalorder %v210, 1
    %vm236 = vcmp.eq.s32.totalorder %v211, 1
    %vm237 = vcmp.eq.s32.totalorder %v212, 1
    %vm238 = vcmp.eq.s32.totalorder %v213, 1
    %vm239 = vcmp.eq.s32.totalorder %v214, 1
    %vm240 = vcmp.eq.s32.totalorder %v215, 1
    %vm241 = vcmp.eq.s32.totalorder %v216, 1
    %vm242 = vcmp.eq.s32.totalorder %v217, 1
    %vm243 = vcmp.eq.s32.totalorder %v218, 1
    %vm244 = vcmp.eq.s32.totalorder %v219, 1
    %vm245 = vcmp.eq.s32.totalorder %v220, 1
    %vm246 = vcmp.eq.s32.totalorder %v221, 1
    %vm247 = vcmp.eq.s32.totalorder %v222, 1
    %vm248 = vcmp.eq.s32.totalorder %v223, 1
    %vm249 = vcmp.eq.s32.totalorder %v224, 1
    %vm250 = vcmp.eq.s32.totalorder %v225, 1
    %vm251 = vcmp.eq.s32.totalorder %v226, 1
    %vm252 = vcmp.eq.s32.totalorder %v227, 1
    %vm253 = vcmp.eq.s32.totalorder %v228, 1
    %vm254 = vcmp.eq.s32.totalorder %v229, 1
    %vm255 = vcmp.eq.s32.totalorder %v230, 1
    %vm256 = vcmp.eq.s32.totalorder %v231, 1
    %vm257 = vcmp.eq.s32.totalorder %v232, 1
    %vm258 = vcmp.eq.s32.totalorder %v233, 1
    %vm259 = vcmp.eq.s32.totalorder %v234, 1
    %vm260 = vmpackc.low %vm235, %vm235
    %vm261 = vmpackc.low %vm236, %vm236
    %vm262 = vmpackc.low %vm237, %vm237
    %vm263 = vmpackc.low %vm238, %vm238
    %vm264 = vmpackc.low %vm239, %vm239
    %vm265 = vmpackc.low %vm240, %vm240
    %vm266 = vmpackc.low %vm241, %vm241
    %vm267 = vmpackc.low %vm242, %vm242
    %vm268 = vmpackc.low %vm243, %vm243
    %vm269 = vmpackc.low %vm244, %vm244
    %vm270 = vmpackc.low %vm245, %vm245
    %vm271 = vmpackc.low %vm246, %vm246
    %vm272 = vmpackc.low %vm247, %vm247
    %vm273 = vmpackc.low %vm248, %vm248
    %vm274 = vmpackc.low %vm249, %vm249
    %vm275 = vmpackc.low %vm250, %vm250
    %vm276 = vmpackc.low %vm251, %vm251
    %vm277 = vmpackc.low %vm252, %vm252
    %vm278 = vmpackc.low %vm253, %vm253
    %vm279 = vmpackc.low %vm254, %vm254
    %vm280 = vmpackc.low %vm255, %vm255
    %vm281 = vmpackc.low %vm256, %vm256
    %vm282 = vmpackc.low %vm257, %vm257
    %vm283 = vmpackc.low %vm258, %vm258
    %vm284 = vmpackc.low %vm259, %vm259
    %v285 = vsel %vm260, %v107, 0
    %v286 = vsel %vm261, %v108, 0
    %v287 = vsel %vm262, %v109, 0
    %v288 = vsel %vm263, %v110, 0
    %v289 = vsel %vm264, %v111, 0
    %v290 = vsel %vm265, %v112, 0
    %v291 = vsel %vm266, %v113, 0
    %v292 = vsel %vm267, %v114, 0
    %v293 = vsel %vm268, %v115, 0
    %v294 = vsel %vm269, %v116, 0
    %v295 = vsel %vm270, %v117, 0
    %v296 = vsel %vm271, %v118, 0
    %v297 = vsel %vm272, %v119, 0
    %v298 = vsel %vm273, %v120, 0
    %v299 = vsel %vm274, %v121, 0
    %v300 = vsel %vm275, %v122, 0
    %v301 = vsel %vm276, %v123, 0
    %v302 = vsel %vm277, %v124, 0
    %v303 = vsel %vm278, %v125, 0
    %v304 = vsel %vm279, %v126, 0
    %v305 = vsel %vm280, %v127, 0
    %v306 = vsel %vm281, %v128, 0
    %v307 = vsel %vm282, %v129, 0
    %v308 = vsel %vm283, %v130, 0
    %v309 = vsel %vm284, %v131, 0
    %v310 = vld [vmem:[%s2] sm:$0xff]
    %v311 = vld [vmem:[%s2 + $0x8] sm:$0xff]
    %v312 = vld [vmem:[%s2 + $0x10] sm:$0xff]
    %v313 = vld [vmem:[%s2 + $0x18] sm:$0xff]
    %v314 = vld [vmem:[%s3] sm:$0x3]
    %v316 = vperm.slane %v314, 0
    %v317 = vperm.slane %v314, 1
    %v345 = vunpack.c.l.b16 %v285
    %v346 = vunpack.c.l.b16 %v286
    %v347 = vunpack.c.l.b16 %v287
    %v348 = vunpack.c.l.b16 %v288
    %v349 = vunpack.c.l.b16 %v289
    %v350 = vunpack.c.l.b16 %v290
    %v351 = vunpack.c.l.b16 %v291
    %v352 = vunpack.c.l.b16 %v292
    %v353 = vunpack.c.l.b16 %v293
    %v354 = vunpack.c.l.b16 %v294
    %v355 = vunpack.c.l.b16 %v295
    %v356 = vunpack.c.l.b16 %v296
    %v357 = vunpack.c.l.b16 %v297
    %v358 = vunpack.c.l.b16 %v298
    %v359 = vunpack.c.l.b16 %v299
    %v360 = vunpack.c.l.b16 %v300
    %v361 = vunpack.c.l.b16 %v301
    %v362 = vunpack.c.l.b16 %v302
    %v363 = vunpack.c.l.b16 %v303
    %v364 = vunpack.c.l.b16 %v304
    %v365 = vunpack.c.l.b16 %v305
    %v366 = vunpack.c.l.b16 %v306
    %v367 = vunpack.c.l.b16 %v307
    %v368 = vunpack.c.l.b16 %v308
    %v369 = vunpack.c.l.b16 %v309
    %v370 = vpack.c.b16 %v346, %v345
    %v371 = vpack.c.b16 %v348, %v347
    %v372 = vpack.c.b16 %v350, %v349
    %v373 = vpack.c.b16 %v352, %v351
    %v374 = vpack.c.b16 %v354, %v353
    %v375 = vpack.c.b16 %v356, %v355
    %v376 = vpack.c.b16 %v358, %v357
    %v377 = vpack.c.b16 %v360, %v359
    %v378 = vpack.c.b16 %v362, %v361
    %v379 = vpack.c.b16 %v364, %v363
    %v380 = vpack.c.b16 %v366, %v365
    %v381 = vpack.c.b16 %v368, %v367
    %v382 = vpack.c.b16 %v369, %v369
    %v387 = vunpack.c.l.b16 %v310
    %v388 = vunpack.c.h.b16 %v310
    %v389 = vunpack.c.l.b16 %v311
    %v390 = vunpack.c.h.b16 %v311
    %v391 = vunpack.c.l.b16 %v312
    %v392 = vunpack.c.h.b16 %v312
    %v393 = vunpack.c.l.b16 %v313
    %v394 = vunpack.c.h.b16 %v313
    %v395 = vpack.c.b16 %v389, %v387
    %v396 = vpack.c.b16 %v390, %v388
    %v397 = vpack.c.b16 %v393, %v391
    %v398 = vpack.c.b16 %v394, %v392
    %vm403 = vcmask 261120
    %v405 = vsel %vm403, %v370, 0
    %v408 = vsel %vm403, %v371, 0
    %v411 = vsel %vm403, %v372, 0
    %v414 = vsel %vm403, %v373, 0
    %v417 = vsel %vm403, %v374, 0
    %v420 = vsel %vm403, %v375, 0
    %v423 = vsel %vm403, %v376, 0
    %v426 = vsel %vm403, %v377, 0
    %v429 = vsel %vm403, %v378, 0
    %v432 = vsel %vm403, %v379, 0
    %v435 = vsel %vm403, %v380, 0
    %v438 = vsel %vm403, %v381, 0
    %v441 = vsel %vm403, %v382, 0
    %443 = vmatpush.bf16.msra.mxu0 0
    %444 = vmatpush.bf16.msra.mxu0 0
    %445 = vmatpush.bf16.msra.mxu0 0
    %446 = vmatpush.bf16.msra.mxu0 0
    %447 = vmatpush.bf16.msra.mxu0 0
    %448 = vmatpush.bf16.msra.mxu0 0
    %449 = vmatpush.bf16.msra.mxu0 %v397
    %450 = vmatpush.bf16.msra.mxu0 %v395
    %451 = vmatmul.bf16.gmra.mxu0 %v405
    %v452 = vpop.f32.mrf.mxu0
    %v453 = vadd.f32 %v316, %v452
    %v454 = vpop.f32.mrf.mxu0
    %v455 = vadd.f32 %v316, %v454
    %456 = vmatmul.bf16.gmra.mxu0 %v408
    %v457 = vpop.f32.mrf.mxu0
    %v458 = vadd.f32 %v316, %v457
    %v459 = vpop.f32.mrf.mxu0
    %v460 = vadd.f32 %v316, %v459
    %461 = vmatmul.bf16.gmra.mxu0 %v411
    %v462 = vpop.f32.mrf.mxu0
    %v463 = vadd.f32 %v316, %v462
    %v464 = vpop.f32.mrf.mxu0
    %v465 = vadd.f32 %v316, %v464
    %466 = vmatmul.bf16.gmra.mxu0 %v414
    %v467 = vpop.f32.mrf.mxu0
    %v468 = vadd.f32 %v316, %v467
    %v469 = vpop.f32.mrf.mxu0
    %v470 = vadd.f32 %v316, %v469
    %471 = vmatmul.bf16.gmra.mxu0 %v417
    %v472 = vpop.f32.mrf.mxu0
    %v473 = vadd.f32 %v316, %v472
    %v474 = vpop.f32.mrf.mxu0
    %v475 = vadd.f32 %v316, %v474
    %476 = vmatmul.bf16.gmra.mxu0 %v420
    %v477 = vpop.f32.mrf.mxu0
    %v478 = vadd.f32 %v316, %v477
    %v479 = vpop.f32.mrf.mxu0
    %v480 = vadd.f32 %v316, %v479
    %481 = vmatmul.bf16.gmra.mxu0 %v423
    %v482 = vpop.f32.mrf.mxu0
    %v483 = vadd.f32 %v316, %v482
    %v484 = vpop.f32.mrf.mxu0
    %v485 = vadd.f32 %v316, %v484
    %486 = vmatmul.bf16.gmra.mxu0 %v426
    %v487 = vpop.f32.mrf.mxu0
    %v488 = vadd.f32 %v316, %v487
    %v489 = vpop.f32.mrf.mxu0
    %v490 = vadd.f32 %v316, %v489
    %491 = vmatmul.bf16.gmra.mxu0 %v429
    %v492 = vpop.f32.mrf.mxu0
    %v493 = vadd.f32 %v316, %v492
    %v494 = vpop.f32.mrf.mxu0
    %v495 = vadd.f32 %v316, %v494
    %496 = vmatmul.bf16.gmra.mxu0 %v432
    %v497 = vpop.f32.mrf.mxu0
    %v498 = vadd.f32 %v316, %v497
    %v499 = vpop.f32.mrf.mxu0
    %v500 = vadd.f32 %v316, %v499
    %501 = vmatmul.bf16.gmra.mxu0 %v435
    %v502 = vpop.f32.mrf.mxu0
    %v503 = vadd.f32 %v316, %v502
    %v504 = vpop.f32.mrf.mxu0
    %v505 = vadd.f32 %v316, %v504
    %506 = vmatmul.bf16.gmra.mxu0 %v438
    %v507 = vpop.f32.mrf.mxu0
    %v508 = vadd.f32 %v316, %v507
    %v509 = vpop.f32.mrf.mxu0
    %v510 = vadd.f32 %v316, %v509
    %511 = vmatmul.bf16.gmra.mxu0 %v441
    %v512 = vpop.f32.mrf.mxu0
    %v513 = vadd.f32 %v316, %v512
    %v514 = vpop.f32.mrf.mxu0
    %515 = vdwg.mxu0
    %516 = vmatpush.bf16.msra.mxu0 0
    %517 = vmatpush.bf16.msra.mxu0 0
    %518 = vmatpush.bf16.msra.mxu0 0
    %519 = vmatpush.bf16.msra.mxu0 0
    %520 = vmatpush.bf16.msra.mxu0 0
    %521 = vmatpush.bf16.msra.mxu0 0
    %522 = vmatpush.bf16.msra.mxu0 %v398
    %523 = vmatpush.bf16.msra.mxu0 %v396
    %524 = vmatmul.bf16.gmra.mxu0 %v405
    %v525 = vpop.f32.mrf.mxu0
    %v526 = vadd.f32 %v317, %v525
    %v527 = vpop.f32.mrf.mxu0
    %v528 = vadd.f32 %v317, %v527
    %529 = vmatmul.bf16.gmra.mxu0 %v408
    %v530 = vpop.f32.mrf.mxu0
    %v531 = vadd.f32 %v317, %v530
    %v532 = vpop.f32.mrf.mxu0
    %v533 = vadd.f32 %v317, %v532
    %534 = vmatmul.bf16.gmra.mxu0 %v411
    %v535 = vpop.f32.mrf.mxu0
    %v536 = vadd.f32 %v317, %v535
    %v537 = vpop.f32.mrf.mxu0
    %v538 = vadd.f32 %v317, %v537
    %539 = vmatmul.bf16.gmra.mxu0 %v414
    %v540 = vpop.f32.mrf.mxu0
    %v541 = vadd.f32 %v317, %v540
    %v542 = vpop.f32.mrf.mxu0
    %v543 = vadd.f32 %v317, %v542
    %544 = vmatmul.bf16.gmra.mxu0 %v417
    %v545 = vpop.f32.mrf.mxu0
    %v546 = vadd.f32 %v317, %v545
    %v547 = vpop.f32.mrf.mxu0
    %v548 = vadd.f32 %v317, %v547
    %549 = vmatmul.bf16.gmra.mxu0 %v420
    %v550 = vpop.f32.mrf.mxu0
    %v551 = vadd.f32 %v317, %v550
    %v552 = vpop.f32.mrf.mxu0
    %v553 = vadd.f32 %v317, %v552
    %554 = vmatmul.bf16.gmra.mxu0 %v423
    %v555 = vpop.f32.mrf.mxu0
    %v556 = vadd.f32 %v317, %v555
    %v557 = vpop.f32.mrf.mxu0
    %v558 = vadd.f32 %v317, %v557
    %559 = vmatmul.bf16.gmra.mxu0 %v426
    %v560 = vpop.f32.mrf.mxu0
    %v561 = vadd.f32 %v317, %v560
    %v562 = vpop.f32.mrf.mxu0
    %v563 = vadd.f32 %v317, %v562
    %564 = vmatmul.bf16.gmra.mxu0 %v429
    %v565 = vpop.f32.mrf.mxu0
    %v566 = vadd.f32 %v317, %v565
    %v567 = vpop.f32.mrf.mxu0
    %v568 = vadd.f32 %v317, %v567
    %569 = vmatmul.bf16.gmra.mxu0 %v432
    %v570 = vpop.f32.mrf.mxu0
    %v571 = vadd.f32 %v317, %v570
    %v572 = vpop.f32.mrf.mxu0
    %v573 = vadd.f32 %v317, %v572
    %574 = vmatmul.bf16.gmra.mxu0 %v435
    %v575 = vpop.f32.mrf.mxu0
    %v576 = vadd.f32 %v317, %v575
    %v577 = vpop.f32.mrf.mxu0
    %v578 = vadd.f32 %v317, %v577
    %579 = vmatmul.bf16.gmra.mxu0 %v438
    %v580 = vpop.f32.mrf.mxu0
    %v581 = vadd.f32 %v317, %v580
    %v582 = vpop.f32.mrf.mxu0
    %v583 = vadd.f32 %v317, %v582
    %584 = vmatmul.bf16.gmra.mxu0 %v441
    %v585 = vpop.f32.mrf.mxu0
    %v586 = vadd.f32 %v317, %v585
    %v587 = vpop.f32.mrf.mxu0
    %588 = vdwg.mxu0
    %v589 = vtanh.pop %v453
    %v590 = vtanh.pop %v455
    %v591 = vtanh.pop %v458
    %v592 = vtanh.pop %v460
    %v593 = vtanh.pop %v463
    %v594 = vtanh.pop %v465
    %v595 = vtanh.pop %v468
    %v596 = vtanh.pop %v470
    %v597 = vtanh.pop %v473
    %v598 = vtanh.pop %v475
    %v599 = vtanh.pop %v478
    %v600 = vtanh.pop %v480
    %v601 = vtanh.pop %v483
    %v602 = vtanh.pop %v485
    %v603 = vtanh.pop %v488
    %v604 = vtanh.pop %v490
    %v605 = vtanh.pop %v493
    %v606 = vtanh.pop %v495
    %v607 = vtanh.pop %v498
    %v608 = vtanh.pop %v500
    %v609 = vtanh.pop %v503
    %v610 = vtanh.pop %v505
    %v611 = vtanh.pop %v508
    %v612 = vtanh.pop %v510
    %v613 = vtanh.pop %v513
    %v614 = vld [vmem:[#allocation2] sm:$0xf]
    %615 = vmatpush.xpose.msra.mxu0 %v604
    %616 = vmatpush.xpose.msra.mxu0 %v603
    %617 = vmatpush.xpose.msra.mxu0 %v602
    %618 = vmatpush.xpose.msra.mxu0 %v601
    %619 = vmatpush.xpose.msra.mxu0 %v600
    %620 = vmatpush.xpose.msra.mxu0 %v599
    %621 = vmatpush.xpose.msra.mxu0 %v598
    %622 = vmatpush.xpose.msra.mxu0 %v597
    %623 = vmatpush.xpose.msra.mxu0 %v596
    %624 = vmatpush.xpose.msra.mxu0 %v595
    %625 = vmatpush.xpose.msra.mxu0 %v594
    %626 = vmatpush.xpose.msra.mxu0 %v593
    %627 = vmatpush.xpose.msra.mxu0 %v592
    %628 = vmatpush.xpose.msra.mxu0 %v591
    %629 = vmatpush.xpose.msra.mxu0 %v590
    %630 = vmatpush.xpose.msra.mxu0 %v589
    %631 = vmatmul.f32.gmra.mxu0 %v614
    %v632 = vpop.f32.mrf.mxu0
    %v633 = vadd.f32 0.0, %v632
    %634 = vdwg.mxu0
    %635 = vmatpush.xpose.msra.mxu0 0.0
    %636 = vmatpush.xpose.msra.mxu0 0.0
    %637 = vmatpush.xpose.msra.mxu0 0.0
    %638 = vmatpush.xpose.msra.mxu0 0.0
    %639 = vmatpush.xpose.msra.mxu0 0.0
    %640 = vmatpush.xpose.msra.mxu0 0.0
    %641 = vmatpush.xpose.msra.mxu0 0.0
    %642 = vmatpush.xpose.msra.mxu0 %v613
    %643 = vmatpush.xpose.msra.mxu0 %v612
    %644 = vmatpush.xpose.msra.mxu0 %v611
    %645 = vmatpush.xpose.msra.mxu0 %v610
    %646 = vmatpush.xpose.msra.mxu0 %v609
    %647 = vmatpush.xpose.msra.mxu0 %v608
    %648 = vmatpush.xpose.msra.mxu0 %v607
    %649 = vmatpush.xpose.msra.mxu0 %v606
    %650 = vmatpush.xpose.msra.mxu0 %v605
    %651 = vmatmul.f32.gmra.mxu0 %v614
    %v652 = vpop.f32.mrf.mxu0
    %v653 = vadd.f32 0.0, %v652
    %654 = vdwg.mxu0
    %v655 = vmul.f32 %v633, 0.088388346
    %v656 = vmul.f32 %v653, 0.088388346
    %v657 = vlaneseq
    %v658 = vand.u32 %v657, 127
    %v659 = vadd.s32 %v658, 128
    %v660 = vadd.s32 %v159, %v658
    %v661 = vadd.s32 %v159, %v659
    %vm662 = vcmp.lt.s32.totalorder %v660, 200
    %vm663 = vcmp.lt.s32.totalorder %v661, 200
    %v664 = vsel %vm662, %v655, -1e+30
    %v665 = vsel %vm663, %v656, -1e+30
    %v668 = vrot.slane %v665, 4
    %vm669 = vcmask 1043456
    %v670 = vsel %vm669, %v664, %v668
    %vm672 = vcmask 588804
    %vm673 = vmor %vm672, %vm669
    %674 = vst.msk [vmem:[#allocation6] sm:$0xff] %vm673, %v670
    %v675 = vld [vmem:[#allocation3] sm:$0xf]
    %v676 = vsel %vm669, %v664, -inf
    %vm677 = vcmask 584704
    %v678 = vsel %vm677, %v665, -inf
    %v679 = vmax.f32 %v676, %v678
    %680 = vmax.xlane.f32.xlu0 %v679
    %v681 = vpop.xlane.xlu0 %680
    %v682 = vmax.f32 %v675, %v681
    %v683 = vsub.f32 %v675, %v682
    %v684 = vmul.f32 %v683, 1.442695
    %v685 = vpow.pop %v684
    %687 = vset.pattern.permute.xlu0 0
    %688 = vperm.xlu0 %687, %v682
    %v689 = vpop.permute.xlu0 %688
    %v691 = vsub.f32 %v664, %v689
    %v692 = vsub.f32 %v665, %v689
    %v693 = vmul.f32 %v691, 1.442695
    %v694 = vpow.pop %v693
    %v695 = vmul.f32 %v692, 1.442695
    %v696 = vpow.pop %v695
    %v697 = vsel %vm662, %v694, 0.0
    %v698 = vsel %vm663, %v696, 0.0
    %v699 = vld [vmem:[#allocation4] sm:$0xf]
    %v700 = vmul.f32 %v685, %v699
    %v701 = vsel %vm669, %v697, 0.0
    %v702 = vsel %vm677, %v698, 0.0
    %v703 = vadd.f32 %v701, %v702
    %704 = vadd.xlane.f32.xlu0 %v703
    %v705 = vpop.xlane.xlu0 %704
    %v706 = vadd.f32 %v700, %v705
    %vm707 = vcmask 3072
    %708 = vst.msk [vmem:[#allocation4] sm:$0xf] %vm707, %v706
    %v709 = vld [vmem:[#allocation5] sm:$0xf]
    %711 = vset.pattern.permute.xlu0 0
    %712 = vperm.xlu0 %711, %v685
    %v713 = vpop.permute.xlu0 %712
    %v715 = vmul.f32 %v713, %v709
    %vm716 = vcmask 588800
    %v718 = vsel %vm716, %v698, 0
    %720 = vmatpush.msra.mxu0 %v563
    %721 = vmatpush.msra.mxu0 %v561
    %722 = vmatpush.msra.mxu0 %v558
    %723 = vmatpush.msra.mxu0 %v556
    %724 = vmatpush.msra.mxu0 %v553
    %725 = vmatpush.msra.mxu0 %v551
    %726 = vmatpush.msra.mxu0 %v548
    %727 = vmatpush.msra.mxu0 %v546
    %728 = vmatpush.msra.mxu0 %v543
    %729 = vmatpush.msra.mxu0 %v541
    %730 = vmatpush.msra.mxu0 %v538
    %731 = vmatpush.msra.mxu0 %v536
    %732 = vmatpush.msra.mxu0 %v533
    %733 = vmatpush.msra.mxu0 %v531
    %734 = vmatpush.msra.mxu0 %v528
    %735 = vmatpush.msra.mxu0 %v526
    %736 = vmatmul.f32.gmra.mxu0 %v697
    %v737 = vpop.f32.mrf.mxu0
    %v738 = vadd.f32 0.0, %v737
    %739 = vdwg.mxu0
    %740 = vmatpush.msra.mxu0 0.0
    %741 = vmatpush.msra.mxu0 0.0
    %742 = vmatpush.msra.mxu0 0.0
    %743 = vmatpush.msra.mxu0 0.0
    %744 = vmatpush.msra.mxu0 0.0
    %745 = vmatpush.msra.mxu0 0.0
    %746 = vmatpush.msra.mxu0 0.0
    %747 = vmatpush.msra.mxu0 %v586
    %748 = vmatpush.msra.mxu0 %v583
    %749 = vmatpush.msra.mxu0 %v581
    %750 = vmatpush.msra.mxu0 %v578
    %751 = vmatpush.msra.mxu0 %v576
    %752 = vmatpush.msra.mxu0 %v573
    %753 = vmatpush.msra.mxu0 %v571
    %754 = vmatpush.msra.mxu0 %v568
    %755 = vmatpush.msra.mxu0 %v566
    %756 = vmatmul.f32.gmra.mxu0 %v718
    %v757 = vpop.f32.mrf.mxu0
    %v758 = vadd.f32 %v738, %v757
    %759 = vdwg.mxu0
    %v760 = vadd.f32 %v715, %v758
    %vm761 = vcmask 257024
    %762 = vst.msk [vmem:[#allocation5] sm:$0xf] %vm761, %v760
    %763 = vst.msk [vmem:[#allocation3] sm:$0xf] %vm707, %v682
    // Predicated region
    $region22: #{tpu_custom_call.1} parent=1 // pred_check
      %p764 = pneg %p57
    $region23: #{tpu_custom_call.1} parent=1 // pred_check_branch
      %766 = sbr.rel (%p764) target = $region25
    $region24: #{tpu_custom_call.1} parent=1 // pred_region
      %v767 = vld [vmem:[#allocation3] sm:$0xf]
      %768 = vst.msk [vmem:[%s5] sm:$0xf] %vm707, %v767
      %v769 = vld [vmem:[#allocation4] sm:$0xf]
      %770 = vst.msk [vmem:[%s6] sm:$0xf] %vm707, %v769
      %v771 = vld [vmem:[#allocation5] sm:$0xf]
      %772 = vst.msk [vmem:[#allocation8] sm:$0xf] %vm761, %v771
    $region25: #{tpu_custom_call.1} parent=1 // pred_fallthru
      _
    // Predicated region
    $region26: #{tpu_custom_call.1} parent=1 // pred_check
      _
    $region27: #{tpu_custom_call.1} parent=1 // pred_check_branch
      %774 = sbr.rel (0) target = $region29
    $region28: #{tpu_custom_call.1} parent=1 // pred_region
      %s775 = sadd.s32 0, 0
      %777 = vsyncadd [#allocation7], 0
      %s778 = smul.addr %s775, 2
      %s779 = smul.addr %s778, 4
      %s780 = scalar_lea.hbm %s4, %s779
      %s782 = sshll.u32 [#allocation6], 4
      %s783 = int_to_ptr.vmem [resolvable:$true] %s782
      %s784 = sshll.u32 %s780, 4
      %s785 = int_to_ptr.hbm [resolvable:$true] %s784
      %787 = dma.vmem_to_hbm [thread:$0]  %s783, 128, %s785, [#allocation7]
    $region29: #{tpu_custom_call.1} parent=1 // pred_fallthru
      _
    // Predicated region
    $region30: #{tpu_custom_call.1} parent=1 // pred_check
      _
    $region31: #{tpu_custom_call.1} parent=1 // pred_check_branch
      %789 = sbr.rel (0) target = $region33
    $region32: #{tpu_custom_call.1} parent=1 // pred_region
      _
    $region33: #{tpu_custom_call.1} parent=1 // pred_fallthru
      _
    // Predicated region
    $region34: #{tpu_custom_call.1} parent=1 // pred_check
      _
    $region35: #{tpu_custom_call.1} parent=1 // pred_check_branch
      %791 = sbr.rel (0) target = $region37
    $region36: #{tpu_custom_call.1} parent=1 // pred_region
      _
    $region37: #{tpu_custom_call.1} parent=1 // pred_fallthru
      _
    // Predicated region
    $region38: #{tpu_custom_call.1} parent=1 // pred_check
      _
    $region39: #{tpu_custom_call.1} parent=1 // pred_check_branch
      %793 = sbr.rel (0) target = $region41
    $region40: #{tpu_custom_call.1} parent=1 // pred_region
      %795 = vsyncadd [#allocation9], 0
      %s797 = sshll.u32 [#allocation8], 4
      %s798 = int_to_ptr.vmem [resolvable:$true] %s797
      %s799 = sshll.u32 %s7, 4
      %s800 = int_to_ptr.hbm [resolvable:$true] %s799
      %802 = dma.vmem_to_hbm [thread:$0]  %s798, 64, %s800, [#allocation9]
    $region41: #{tpu_custom_call.1} parent=1 // pred_fallthru
      _
    // Predicated region
    $region42: #{tpu_custom_call.1} parent=1 // pred_check
      _
    $region43: #{tpu_custom_call.1} parent=1 // pred_check_branch
      %804 = sbr.rel (0) target = $region45
    $region44: #{tpu_custom_call.1} parent=1 // pred_region
      %806 = dma.done [#allocation7], 128
    $region45: #{tpu_custom_call.1} parent=1 // pred_fallthru
      _
    // Predicated region
    $region46: #{tpu_custom_call.1} parent=1 // pred_check
      _
    $region47: #{tpu_custom_call.1} parent=1 // pred_check_branch
      %808 = sbr.rel (0) target = $region49
    $region48: #{tpu_custom_call.1} parent=1 // pred_region
      _
    $region49: #{tpu_custom_call.1} parent=1 // pred_fallthru
      _
    // Predicated region
    $region50: #{tpu_custom_call.1} parent=1 // pred_check
      _
    $region51: #{tpu_custom_call.1} parent=1 // pred_check_branch
      %810 = sbr.rel (0) target = $region53
    $region52: #{tpu_custom_call.1} parent=1 // pred_region
      _
    $region53: #{tpu_custom_call.1} parent=1 // pred_fallthru
      _
    // Predicated region
    $region54: #{tpu_custom_call.1} parent=1 // pred_check
      _
    $region55: #{tpu_custom_call.1} parent=1 // pred_check_branch
      %812 = sbr.rel (0) target = $region57
    $region56: #{tpu_custom_call.1} parent=1 // pred_region
      %814 = dma.done [#allocation9], 64
    $region57: #{tpu_custom_call.1} parent=1 // pred_fallthru
      _
    %815 = vsyncpa [#allocation7], 1
    %816 = vsyncpa [#allocation9], 1

</llo_original>
